<compile_context>
chip_gen: v5e
topology: v5e:2x2
jax: 0.10.0
libtpu: 0.0.40
codegen_flags: <defaults>
</compile_context>

<pallas_src>
import functools

import jax
import jax.numpy as jnp
from jax.experimental import pallas as pl
from jax.experimental.pallas import tpu as pltpu

BN_EPS = 1e-5
LANE = 128


def _cdiv(a, b):
    return -(-a // b)


def _round_up(x, m):
    return _cdiv(x, m) * m


@functools.lru_cache(maxsize=None)
def _tpu_config():
    """Generation-aware tiling knobs (v5e/v6e: 128 MiB VMEM, 1 TC; v7x: 64 MiB, 2 TC)."""
    vmem = 64 * 1024 * 1024
    try:
        info = pltpu.get_tpu_info()
        vmem = int(getattr(info, "vmem_capacity_bytes", vmem)) or vmem
    except Exception:  # off-TPU tracing / API drift -> conservative (v7x-safe) defaults
        pass
    if vmem >= 100 * 1024 * 1024:
        # v5e / v6e: single TensorCore, plenty of VMEM -> big M tiles, no forced split.
        return {"num_cores": 1, "budget": 80 * 1024 * 1024,
                "limit": 100 * 1024 * 1024, "desired_tm": 1024}
    # v7x: 2 TensorCores share the "parallel" axis, 64 MiB VMEM each.
    return {"num_cores": 2, "budget": 40 * 1024 * 1024,
            "limit": 52 * 1024 * 1024, "desired_tm": 512}


# ------------------------------ Pallas kernel ------------------------------- #

def _gemm_kernel(p_ref, w_ref, b_ref, *rest, has_residual, split, multi_k):
    """out = relu(p @ w + bias [+ residual]); optional un-ReLU'd split output."""
    idx = 0
    res_ref = None
    if has_residual:
        res_ref = rest[idx]; idx += 1
    o_ref = rest[idx]; idx += 1
    o2_ref = None
    if split is not None:
        o2_ref = rest[idx]; idx += 1
    acc_ref = rest[idx] if multi_k else None

    def epilogue(acc):
        acc = acc + b_ref[...]                                  # (tm, Ct) f32
        if split is not None:
            o2_ref[...] = acc[:, split:].astype(o2_ref.dtype)   # downsample branch: no ReLU
            acc = acc[:, :split]
        if has_residual:
            acc = acc + res_ref[...].astype(jnp.float32)
        o_ref[...] = jnp.maximum(acc, 0.0).astype(o_ref.dtype)

    if not multi_k:
        # Single K step: no scratch, no zeroing -- dot + epilogue straight to output.
        epilogue(jnp.dot(p_ref[...], w_ref[...], preferred_element_type=jnp.float32))
    else:
        @pl.when(pl.program_id(1) == 0)
        def _():
            acc_ref[...] = jnp.zeros_like(acc_ref)

        acc_ref[...] += jnp.dot(p_ref[...], w_ref[...],
                                preferred_element_type=jnp.float32)

        @pl.when(pl.program_id(1) == pl.num_programs(1) - 1)
        def _():
            epilogue(acc_ref[...])


def fused_conv_gemm(patches, w, bias, *, residual=None, split=None,
                    out_dtype=jnp.bfloat16):
    """relu(patches @ w + bias [+ residual]) with lane-dense padded columns.

    patches : (M, K) bf16 (im2col rows)
    w       : (K, Ct) bf16, Ct multiple of 128 (BN scale pre-folded, pre-padded)
    bias    : (1, Ct) f32
    residual: optional (M, Ct) array added before the ReLU (conv2 + skip).
    split   : optional column offset (multiple of 128).  Columns [0, split) are the
              ReLU'd main output; columns [split, Ct) are emitted as a second,
              un-ReLU'd bf16 output (the fused 1x1 downsample branch).
    Returns (M, split) main output [, (M, Ct - split) second output].
    """
    M, K = patches.shape
    Kw, Ct = w.shape
    assert K == Kw and Ct % LANE == 0 and bias.shape == (1, Ct)
    if split is not None:
        assert 0 < split < Ct and split % LANE == 0 and residual is None
    has_residual = residual is not None
    if has_residual:
        assert residual.shape == (M, Ct)

    cfg = _tpu_config()
    out_bytes = 2 if out_dtype == jnp.bfloat16 else 4
    res_bytes = residual.dtype.itemsize if has_residual else 0

    def est(tm_, tk_):
        b = 2 * tm_ * tk_ * 2              # patches tile, bf16, double-buffered
        b += 2 * tk_ * Ct * 2              # weight tile, bf16
        b += 2 * Ct * 4                    # bias (resident)
        b += 2 * tm_ * Ct * out_bytes      # output tile(s)
        if has_residual:
            b += 2 * tm_ * Ct * res_bytes  # residual tile
        if tk_ < K:
            b += tm_ * Ct * 4              # f32 accumulator scratch (K tiled only)
        return b

    # --- M tile: big, multiple of 128; K tile: full K if it fits, else a divisor --- #
    tm = min(cfg["desired_tm"], _round_up(M, LANE))
    tk = K
    if est(tm, tk) > cfg["budget"]:
        for cand in (2048, 1536, 1152, 1024, 768, 640, 576, 512, 384, 256, 128):
            if cand < K and K % cand == 0 and est(tm, cand) <= cfg["budget"]:
                tk = cand
                break
        # TODO(synk): if no 128-multiple divisor of K fits (never for ResNet-18 shapes)
        # we would need an explicit zero-pad of the K tail; keep full K instead.
    while est(tm, tk) > cfg["budget"] and tm > LANE:
        tm = max(LANE, (tm // 2) // LANE * LANE)

    nm = _cdiv(M, tm)
    # v7x: the "parallel" M axis is sharded across 2 TensorCores -> prefer even nm.
    if cfg["num_cores"] >= 2 and nm > 1 and nm % 2 == 1:
        cand_tm = _round_up(_cdiv(M, nm + 1), LANE)
        if (cand_tm >= LANE and _cdiv(M, cand_tm) % 2 == 0
                and est(cand_tm, tk) <= cfg["budget"]):
            tm = cand_tm
            nm = _cdiv(M, tm)

    nk = _cdiv(K, tk)
    multi_k = nk > 1

    if multi_k:
        grid = (nm, nk)
        dims = ("parallel", "arbitrary")
        p_spec = pl.BlockSpec((tm, tk), lambda i, k: (i, k))
        w_spec = pl.BlockSpec((tk, Ct), lambda i, k: (k, 0))
        b_spec = pl.BlockSpec((1, Ct), lambda i, k: (0, 0))
        row_map = lambda i, k: (i, 0)
        scratch = [pltpu.VMEM((tm, Ct), jnp.float32)]
    else:
        grid = (nm,)
        dims = ("parallel",)
        p_spec = pl.BlockSpec((tm, K), lambda i: (i, 0))
        w_spec = pl.BlockSpec((K, Ct), lambda i: (0, 0))
        b_spec = pl.BlockSpec((1, Ct), lambda i: (0, 0))
        row_map = lambda i: (i, 0)
        scratch = []

    in_specs = [p_spec, w_spec, b_spec]
    operands = [patches, w, bias]
    if has_residual:
        in_specs.append(pl.BlockSpec((tm, Ct), row_map))
        operands.append(residual)

    if split is not None:
        out_shape = (jax.ShapeDtypeStruct((M, split), out_dtype),
                     jax.ShapeDtypeStruct((M, Ct - split), jnp.bfloat16))
        out_specs = (pl.BlockSpec((tm, split), row_map),
                     pl.BlockSpec((tm, Ct - split), row_map))
    else:
        out_shape = jax.ShapeDtypeStruct((M, Ct), out_dtype)
        out_specs = pl.BlockSpec((tm, Ct), row_map)

    flops = 2 * M * K * Ct
    bytes_accessed = (M * K * 2 + K * Ct * 2 + Ct * 4
                      + M * Ct * out_bytes + M * Ct * res_bytes)

    kern = functools.partial(_gemm_kernel, has_residual=has_residual,
                             split=split, multi_k=multi_k)
    return pl.pallas_call(
        kern,
        out_shape=out_shape,
        grid_spec=pltpu.PrefetchScalarGridSpec(
            num_scalar_prefetch=0,
            grid=grid,
            in_specs=in_specs,
            out_specs=out_specs,
            scratch_shapes=scratch,
        ),
        compiler_params=pltpu.CompilerParams(
            dimension_semantics=dims,
            vmem_limit_bytes=cfg["limit"],
        ),
        cost_estimate=pl.CostEstimate(flops=flops, transcendentals=0,
                                      bytes_accessed=bytes_accessed),
    )(*operands)


# --------------------------------- JAX glue ---------------------------------- #

def im2col(x_nhwc, kh, kw, stride, padding):
    """x (N,H,W,C) -> patches (N*Ho*Wo, kh*kw*C); channel order: (ky, kx, cin)."""
    # TODO(synk): the remaining big win is streaming the taps straight from the NHWC
    # tensor inside the kernel (tap-shifted index_maps); here the patch matrix is
    # materialized once, already in bf16, which removes the extra pad/cast passes.
    N, H, W, C = x_nhwc.shape
    xp = jnp.pad(x_nhwc, ((0, 0), (padding, padding), (padding, padding), (0, 0)))
    Ho = (H + 2 * padding - kh) // stride + 1
    Wo = (W + 2 * padding - kw) // stride + 1
    cols = []
    for ky in range(kh):
        for kx in range(kw):
            cols.append(xp[:, ky:ky + Ho * stride:stride,
                           kx:kx + Wo * stride:stride, :])
    patches = jnp.concatenate(cols, axis=-1)
    return patches.reshape(N * Ho * Wo, kh * kw * C), (N, Ho, Wo)


def flatten_oihw(w_oihw):
    """(O,I,KH,KW) -> (KH*KW*I, O), matching the im2col channel order."""
    o, i, kh, kw = w_oihw.shape
    return jnp.transpose(w_oihw, (2, 3, 1, 0)).reshape(kh * kw * i, o)


def fold_bn(bn):
    # TODO(synk): training-mode batch-statistics BN not implemented; inference BN
    # (running stats) is folded into a per-channel scale/bias.
    scale = bn["gamma"] / jnp.sqrt(bn["running_var"] + BN_EPS)
    bias = bn["beta"] - bn["running_mean"] * scale
    return scale, bias


def dcf_weight(coef, bases):
    """Conv_DCFDE weight (num_member=1): coef (O,I,B) x bases (B,KH,KW) -> (O,I,KH,KW)."""
    return jnp.einsum("oib,bhw->oihw", coef, bases)


def prepare_block_params(params, stride):
    """One-time weight prep: DCF weights, BN fold, flatten, lane padding, bf16 cast."""
    w1 = dcf_weight(params["coef1"], params["bases1"])   # (planes, cin, 3, 3)
    w2 = dcf_weight(params["coef2"], params["bases2"])   # (planes, planes, 3, 3)
    planes, inplanes = int(w1.shape[0]), int(w1.shape[1])
    s1, b1 = fold_bn(params["bn1"])
    s2, b2 = fold_bn(params["bn2"])
    w1f = flatten_oihw(w1) * s1[None, :]                  # (9*cin, planes)
    w2f = flatten_oihw(w2) * s2[None, :]                  # (9*planes, planes)
    cpad = _round_up(planes, LANE)
    has_ds = "w_ds" in params

    if has_ds:
        # Fuse the 1x1/stride-s downsample conv (+ its BN) into conv1's GEMM: it reads
        # exactly the centre tap (ky=kx=1) of the 3x3/pad-1 patch matrix, so its
        # scale-folded weights occupy rows [4*cin, 5*cin) of a lane-aligned second
        # column block, emitted by the kernel as a separate, un-ReLU'd output.
        sd, bd = fold_bn(params["bn_ds"])
        wdsf = flatten_oihw(params["w_ds"]) * sd[None, :]  # (cin, planes)
        K1 = 9 * inplanes
        w1_big = jnp.zeros((K1, 2 * cpad), jnp.float32)
        w1_big = w1_big.at[:, :planes].set(w1f)
        w1_big = w1_big.at[4 * inplanes:5 * inplanes, cpad:cpad + planes].set(wdsf)
        b1_big = jnp.zeros((1, 2 * cpad), jnp.float32)
        b1_big = b1_big.at[0, :planes].set(b1)
        b1_big = b1_big.at[0, cpad:cpad + planes].set(bd)
        w1p, b1p, split1 = w1_big.astype(jnp.bfloat16), b1_big, cpad
    else:
        w1p = jnp.pad(w1f, ((0, 0), (0, cpad - planes))).astype(jnp.bfloat16)
        b1p = jnp.pad(b1[None, :], ((0, 0), (0, cpad - planes)))
        split1 = None

    w2p = jnp.pad(w2f, ((0, 0), (0, cpad - planes))).astype(jnp.bfloat16)
    b2p = jnp.pad(b2[None, :], ((0, 0), (0, cpad - planes)))

    arrays = {"w1": w1p, "b1": b1p.astype(jnp.float32),
              "w2": w2p, "b2": b2p.astype(jnp.float32)}
    meta = {"planes": planes, "inplanes": inplanes, "stride": stride,
            "has_ds": has_ds, "split1": split1, "cpad": cpad}
    return arrays, meta


def basic_block_forward(x_nchw, arrays, *, meta):
    planes, cin = meta["planes"], meta["inplanes"]
    stride, cpad = meta["stride"], meta["cpad"]

    # Single fused pass: NCHW -> NHWC, f32 -> bf16 and im2col, so the patch matrix
    # hits HBM exactly once, already in MXU input precision.
    x = jnp.transpose(x_nchw, (0, 2, 3, 1)).astype(jnp.bfloat16)
    p1, (n, ho, wo) = im2col(x, 3, 3, stride, 1)
    M = p1.shape[0]

    if meta["has_ds"]:
        # conv1+bn1+relu and downsample conv+bn in ONE kernel / one pass over p1;
        # the residual comes out as its own lane-aligned bf16 output (no re-pad pass).
        out1, residual = fused_conv_gemm(p1, arrays["w1"], arrays["b1"],
                                         split=meta["split1"],
                                         out_dtype=jnp.bfloat16)
    else:
        assert stride == 1 and cin == planes, \
            "identity residual requires stride == 1 and inplanes == planes"
        out1 = fused_conv_gemm(p1, arrays["w1"], arrays["b1"],
                               out_dtype=jnp.bfloat16)
        residual = x.reshape(M, cin)
        if cin < cpad:   # lane-pad identity residual to conv2's output width
            residual = jnp.pad(residual, ((0, 0), (0, cpad - cin)))

    # conv2 + bn2 + residual add + relu, fused in one kernel.
    p2, _ = im2col(out1[:, :planes].reshape(n, ho, wo, planes), 3, 3, 1, 1)
    out2 = fused_conv_gemm(p2, arrays["w2"], arrays["b2"],
                           residual=residual, out_dtype=jnp.float32)
    out2 = out2[:, :planes].reshape(n, ho, wo, planes)
    return jnp.transpose(out2, (0, 3, 1, 2))   # back to NCHW


# ----------------------------- pure-JAX reference ----------------------------- #
# Mirrors the module's inference math (conv -> BN -> relu, downsample, add, relu)
# at the same precision as the kernel path (bf16 MXU inputs / bf16 intermediates,
# f32 accumulation and epilogue).

def _ref_conv_bn(x, w_oihw, bn, stride, padding):
    s = bn["gamma"] / jnp.sqrt(bn["running_var"] + BN_EPS)
    b = bn["beta"] - bn["running_mean"] * s
    w_fold = w_oihw * s[:, None, None, None]
    y = jax.lax.conv_general_dilated(
        x.astype(jnp.bfloat16), w_fold.astype(jnp.bfloat16),
        window_strides=(stride, stride),
        padding=[(padding, padding), (padding, padding)],
        dimension_numbers=("NCHW", "OIHW", "NCHW"),
        preferred_element_type=jnp.float32)
    return y + b[None, :, None, None]


def basic_block_reference(x, params, stride):
    w1 = dcf_weight(params["coef1"], params["bases1"])
    w2 = dcf_weight(params["coef2"], params["bases2"])
    out1 = jax.nn.relu(_ref_conv_bn(x, w1, params["bn1"], stride, 1))
    out1 = out1.astype(jnp.bfloat16).astype(jnp.float32)      # kernel emits out1 in bf16
    out = _ref_conv_bn(out1, w2, params["bn2"], 1, 1)
    if "w_ds" in params:
        residual = _ref_conv_bn(x, params["w_ds"], params["bn_ds"], stride, 0)
    else:
        residual = x
    residual = residual.astype(jnp.bfloat16).astype(jnp.float32)  # kernel carries bf16
    return jax.nn.relu(out + residual)


def init_basic_block_params(key, inplanes, planes, stride, num_bases=12):
    ks = jax.random.split(key, 8)

    def bn_params(k, c):
        k1, k2, k3 = jax.random.split(k, 3)
        return {
            "gamma": 1.0 + 0.1 * jax.random.normal(k1, (c,), jnp.float32),
            "beta": 0.1 * jax.random.normal(k2, (c,), jnp.float32),
            "running_mean": 0.1 * jax.random.normal(k3, (c,), jnp.float32),
            "running_var": jnp.ones((c,), jnp.float32),
        }

    params = {
        "bases1": 0.3 * jax.random.normal(ks[0], (num_bases, 3, 3), jnp.float32),
        "coef1": 0.3 * jax.random.normal(ks[1], (planes, inplanes, num_bases), jnp.float32),
        "bn1": bn_params(ks[2], planes),
        "bases2": 0.3 * jax.random.normal(ks[3], (num_bases, 3, 3), jnp.float32),
        "coef2": 0.3 * jax.random.normal(ks[4], (planes, planes, num_bases), jnp.float32),
        "bn2": bn_params(ks[5], planes),
    }
    if stride != 1 or inplanes != planes:
        params["w_ds"] = 0.3 * jax.random.normal(ks[6], (planes, inplanes, 1, 1), jnp.float32)
        params["bn_ds"] = bn_params(ks[7], planes)
    return params


# ------------------------------------ main ------------------------------------ #

if __name__ == "__main__":
    key = jax.random.PRNGKey(0)
    k_x, k_p = jax.random.split(key)

    N, inplanes, H, W = 2, 4, 16, 16
    planes, stride = 8, 2          # exercises the fused downsample branch

    x = jax.random.normal(k_x, (N, inplanes, H, W), jnp.float32)
    params = init_basic_block_params(k_p, inplanes, planes, stride)

    arrays, meta = prepare_block_params(params, stride)   # one-time weight prep
    fwd = jax.jit(functools.partial(basic_block_forward, meta=meta))
    out = jax.block_until_ready(fwd(x, arrays))
    ref = jax.block_until_ready(basic_block_reference(x, params, stride))

    assert out.shape == (N, planes, H // stride, W // stride), out.shape
    err = float(jnp.max(jnp.abs(out - ref)))
    assert err < 2e-2, err        # bf16 MXU inputs / intermediates, f32 accumulation
    print("KERNEL_OK")
</pallas_src>

<mosaic_0001>
module attributes {stable_mosaic.version = 11 : i64} {
  func.func @_gemm_kernel(%arg0: i32, %arg1: memref<128x36xbf16, #tpu.memory_space<vmem>>, %arg2: memref<36x256xbf16, #tpu.memory_space<vmem>>, %arg3: memref<1x256xf32, #tpu.memory_space<vmem>>, %arg4: memref<128x128xbf16, #tpu.memory_space<vmem>>, %arg5: memref<128x128xbf16, #tpu.memory_space<vmem>>) attributes {dimension_semantics = [#tpu.dimension_semantics<parallel>], iteration_bounds = array<i64: 1>, scalar_prefetch = 0 : i64, scratch_operands = 0 : i64, tpu.core_type = #tpu.core_type<tc>, window_params = [{transform_indices = @transform_0, window_bounds = array<i64: 128, 36>}, {pipeline_mode = #tpu.pipeline_mode<synchronous>, transform_indices = @transform_1, window_bounds = array<i64: 36, 256>}, {pipeline_mode = #tpu.pipeline_mode<synchronous>, transform_indices = @transform_2, window_bounds = array<i64: 1, 256>}, {transform_indices = @transform_3, window_bounds = array<i64: 128, 128>}, {transform_indices = @transform_4, window_bounds = array<i64: 128, 128>}]} {
    %c0 = arith.constant 0 : index
    %c0_0 = arith.constant 0 : index
    %0 = vector.load %arg1[%c0, %c0_0] : memref<128x36xbf16, #tpu.memory_space<vmem>>, vector<128x36xbf16>
    %c0_1 = arith.constant 0 : index
    %c0_2 = arith.constant 0 : index
    %1 = vector.load %arg2[%c0_1, %c0_2] : memref<36x256xbf16, #tpu.memory_space<vmem>>, vector<36x256xbf16>
    %cst = arith.constant dense<0.000000e+00> : vector<128x256xf32>
    %2 = tpu.matmul %0, %1, %cst {dimension_numbers = #tpu.dot_dimension_numbers<[1], [0], [0], [1], [0, 0, 1, 1], [], []>} : vector<128x36xbf16>, vector<36x256xbf16>, vector<128x256xf32> -> vector<128x256xf32>
    %c0_3 = arith.constant 0 : index
    %c0_4 = arith.constant 0 : index
    %3 = vector.load %arg3[%c0_3, %c0_4] : memref<1x256xf32, #tpu.memory_space<vmem>>, vector<1x256xf32>
    %4 = vector.broadcast %3 : vector<1x256xf32> to vector<128x256xf32>
    %5 = arith.addf %2, %4 : vector<128x256xf32>
    %6 = vector.extract_strided_slice %5 {offsets = [0, 128], sizes = [128, 128], strides = [1, 1]} : vector<128x256xf32> to vector<128x128xf32>
    %7 = arith.truncf %6 : vector<128x128xf32> to vector<128x128xbf16>
    %c0_5 = arith.constant 0 : index
    %c0_6 = arith.constant 0 : index
    %8 = vector.load %arg5[%c0_5, %c0_6] : memref<128x128xbf16, #tpu.memory_space<vmem>>, vector<128x128xbf16>
    tpu.vector_store %arg5[%c0_5, %c0_6], %7 {strides = array<i32>} : memref<128x128xbf16, #tpu.memory_space<vmem>>, vector<128x128xbf16>,
    %9 = vector.extract_strided_slice %5 {offsets = [0, 0], sizes = [128, 128], strides = [1, 1]} : vector<128x256xf32> to vector<128x128xf32>
    %cst_7 = arith.constant 0.000000e+00 : f32
    %10 = vector.broadcast %cst_7 : f32 to vector<128x128xf32>
    %11 = arith.maximumf %9, %10 : vector<128x128xf32>
    %12 = arith.truncf %11 : vector<128x128xf32> to vector<128x128xbf16>
    %c0_8 = arith.constant 0 : index
    %c0_9 = arith.constant 0 : index
    %13 = vector.load %arg4[%c0_8, %c0_9] : memref<128x128xbf16, #tpu.memory_space<vmem>>, vector<128x128xbf16>
    tpu.vector_store %arg4[%c0_8, %c0_9], %12 {strides = array<i32>} : memref<128x128xbf16, #tpu.memory_space<vmem>>, vector<128x128xbf16>,
    return
  }
  func.func @transform_0(%arg0: i32) -> (i32, i32) {
    %c0_i32 = arith.constant 0 : i32
    %c0_i32_0 = arith.constant 0 : i32
    return %arg0, %c0_i32 : i32, i32
  }
  func.func @transform_1(%arg0: i32) -> (i32, i32) {
    %c0_i32 = arith.constant 0 : i32
    %c0_i32_0 = arith.constant 0 : i32
    %c0_i32_1 = arith.constant 0 : i32
    return %c0_i32, %c0_i32_0 : i32, i32
  }
  func.func @transform_2(%arg0: i32) -> (i32, i32) {
    %c0_i32 = arith.constant 0 : i32
    %c0_i32_0 = arith.constant 0 : i32
    %c0_i32_1 = arith.constant 0 : i32
    return %c0_i32, %c0_i32_0 : i32, i32
  }
  func.func @transform_3(%arg0: i32) -> (i32, i32) {
    %c0_i32 = arith.constant 0 : i32
    %c0_i32_0 = arith.constant 0 : i32
    return %arg0, %c0_i32 : i32, i32
  }
  func.func @transform_4(%arg0: i32) -> (i32, i32) {
    %c0_i32 = arith.constant 0 : i32
    %c0_i32_0 = arith.constant 0 : i32
    return %arg0, %c0_i32 : i32, i32
  }
}

module attributes {stable_mosaic.version = 11 : i64} {
  func.func @_gemm_kernel(%arg0: i32, %arg1: memref<128x72xbf16, #tpu.memory_space<vmem>>, %arg2: memref<72x128xbf16, #tpu.memory_space<vmem>>, %arg3: memref<1x128xf32, #tpu.memory_space<vmem>>, %arg4: memref<128x128xbf16, #tpu.memory_space<vmem>>, %arg5: memref<128x128xf32, #tpu.memory_space<vmem>>) attributes {dimension_semantics = [#tpu.dimension_semantics<parallel>], iteration_bounds = array<i64: 1>, scalar_prefetch = 0 : i64, scratch_operands = 0 : i64, tpu.core_type = #tpu.core_type<tc>, window_params = [{transform_indices = @transform_0, window_bounds = array<i64: 128, 72>}, {pipeline_mode = #tpu.pipeline_mode<synchronous>, transform_indices = @transform_1, window_bounds = array<i64: 72, 128>}, {pipeline_mode = #tpu.pipeline_mode<synchronous>, transform_indices = @transform_2, window_bounds = array<i64: 1, 128>}, {transform_indices = @transform_3, window_bounds = array<i64: 128, 128>}, {transform_indices = @transform_4, window_bounds = array<i64: 128, 128>}]} {
    %c0 = arith.constant 0 : index
    %c0_0 = arith.constant 0 : index
    %0 = vector.load %arg1[%c0, %c0_0] : memref<128x72xbf16, #tpu.memory_space<vmem>>, vector<128x72xbf16>
    %c0_1 = arith.constant 0 : index
    %c0_2 = arith.constant 0 : index
    %1 = vector.load %arg2[%c0_1, %c0_2] : memref<72x128xbf16, #tpu.memory_space<vmem>>, vector<72x128xbf16>
    %cst = arith.constant dense<0.000000e+00> : vector<128x128xf32>
    %2 = tpu.matmul %0, %1, %cst {dimension_numbers = #tpu.dot_dimension_numbers<[1], [0], [0], [1], [0, 0, 1, 1], [], []>} : vector<128x72xbf16>, vector<72x128xbf16>, vector<128x128xf32> -> vector<128x128xf32>
    %c0_3 = arith.constant 0 : index
    %c0_4 = arith.constant 0 : index
    %3 = vector.load %arg3[%c0_3, %c0_4] : memref<1x128xf32, #tpu.memory_space<vmem>>, vector<1x128xf32>
    %4 = vector.broadcast %3 : vector<1x128xf32> to vector<128x128xf32>
    %5 = arith.addf %2, %4 : vector<128x128xf32>
    %c0_5 = arith.constant 0 : index
    %c0_6 = arith.constant 0 : index
    %6 = vector.load %arg4[%c0_5, %c0_6] : memref<128x128xbf16, #tpu.memory_space<vmem>>, vector<128x128xbf16>
    %7 = arith.extf %6 : vector<128x128xbf16> to vector<128x128xf32>
    %8 = arith.addf %5, %7 : vector<128x128xf32>
    %cst_7 = arith.constant 0.000000e+00 : f32
    %9 = vector.broadcast %cst_7 : f32 to vector<128x128xf32>
    %10 = arith.maximumf %8, %9 : vector<128x128xf32>
    %c0_8 = arith.constant 0 : index
    %c0_9 = arith.constant 0 : index
    %11 = vector.load %arg5[%c0_8, %c0_9] : memref<128x128xf32, #tpu.memory_space<vmem>>, vector<128x128xf32>
    tpu.vector_store %arg5[%c0_8, %c0_9], %10 {strides = array<i32>} : memref<128x128xf32, #tpu.memory_space<vmem>>, vector<128x128xf32>,
    return
  }
  func.func @transform_0(%arg0: i32) -> (i32, i32) {
    %c0_i32 = arith.constant 0 : i32
    %c0_i32_0 = arith.constant 0 : i32
    return %arg0, %c0_i32 : i32, i32
  }
  func.func @transform_1(%arg0: i32) -> (i32, i32) {
    %c0_i32 = arith.constant 0 : i32
    %c0_i32_0 = arith.constant 0 : i32
    %c0_i32_1 = arith.constant 0 : i32
    return %c0_i32, %c0_i32_0 : i32, i32
  }
  func.func @transform_2(%arg0: i32) -> (i32, i32) {
    %c0_i32 = arith.constant 0 : i32
    %c0_i32_0 = arith.constant 0 : i32
    %c0_i32_1 = arith.constant 0 : i32
    return %c0_i32, %c0_i32_0 : i32, i32
  }
  func.func @transform_3(%arg0: i32) -> (i32, i32) {
    %c0_i32 = arith.constant 0 : i32
    %c0_i32_0 = arith.constant 0 : i32
    return %arg0, %c0_i32 : i32, i32
  }
  func.func @transform_4(%arg0: i32) -> (i32, i32) {
    %c0_i32 = arith.constant 0 : i32
    %c0_i32_0 = arith.constant 0 : i32
    return %arg0, %c0_i32 : i32, i32
  }
}

</mosaic_0001>

<llo_original>
// kernel: basic_block_forward.3
$region0: #{basic_block_forward.3}
  #allocation0 [shape = 'u32[]', space=smem, size = 0x4, offset = 0x4, fixed_abs, tag = 'smem constant byte address 0x4 - core index']
  #allocation1 [shape = 'u32[72,128]{1,0:T(1,128)}', space=vmem, size = 0x9000, scoped, tag = 'internal scratch']
  %s0 = inlined_call_operand.vmem [shape: bf16[128,72], index: 0, kind: input, shape index: {}]
  %s1 = inlined_call_operand.vmem [shape: bf16[72,128], index: 1, kind: input, shape index: {}]
  %s2 = inlined_call_operand.vmem [shape: f32[1,128], index: 2, kind: input, shape index: {}]
  %s3 = inlined_call_operand.vmem [shape: bf16[128,128], index: 3, kind: input, shape index: {}]
  %s4 = inlined_call_operand.vmem [shape: f32[128,128], index: 4, kind: output, shape index: {}]
  %s5 = sld [smem:[#allocation0]]
  $region26: #{basic_block_forward.3} parent=0
    _
  %s7 = ssub.s32 1, %s5
  %s8 = scalar_select 0, %s7, %s5
  // Predicated region
  $region2: #{basic_block_forward.3} parent=0 // pred_check
    _
  $region3: #{basic_block_forward.3} parent=0 // pred_check_branch
    %10 = sbr.rel (0) target = $region5
  $region4: #{basic_block_forward.3} parent=0 // pred_region
    _
  $region5: #{basic_block_forward.3} parent=0 // pred_fallthru
    _
  // Predicated region
  $region6: #{basic_block_forward.3} parent=0 // pred_check
    _
  $region7: #{basic_block_forward.3} parent=0 // pred_check_branch
    %12 = sbr.rel (0) target = $region9
  $region8: #{basic_block_forward.3} parent=0 // pred_region
    _
  $region9: #{basic_block_forward.3} parent=0 // pred_fallthru
    _
  // Predicated region
  $region10: #{basic_block_forward.3} parent=0 // pred_check
    _
  $region11: #{basic_block_forward.3} parent=0 // pred_check_branch
    %14 = sbr.rel (0) target = $region13
  $region12: #{basic_block_forward.3} parent=0 // pred_region
    _
  $region13: #{basic_block_forward.3} parent=0 // pred_fallthru
    _
  // Predicated region
  $region14: #{basic_block_forward.3} parent=0 // pred_check
    _
  $region15: #{basic_block_forward.3} parent=0 // pred_check_branch
    %16 = sbr.rel (0) target = $region17
  $region16: #{basic_block_forward.3} parent=0 // pred_region
    _
  $region17: #{basic_block_forward.3} parent=0 // pred_fallthru
    _
  %v18 = vld [vmem:[%s0] sm:$0xf]
  %v19 = vld [vmem:[%s0 + $0x4] sm:$0xf]
  %v20 = vld [vmem:[%s0 + $0x8] sm:$0xf]
  %v21 = vld [vmem:[%s0 + $0xc] sm:$0xf]
  %v22 = vld [vmem:[%s0 + $0x10] sm:$0xf]
  %v23 = vld [vmem:[%s0 + $0x14] sm:$0xf]
  %v24 = vld [vmem:[%s0 + $0x18] sm:$0xf]
  %v25 = vld [vmem:[%s0 + $0x1c] sm:$0xf]
  %v26 = vld [vmem:[%s0 + $0x20] sm:$0xf]
  %v27 = vld [vmem:[%s0 + $0x24] sm:$0xf]
  %v28 = vld [vmem:[%s0 + $0x28] sm:$0xf]
  %v29 = vld [vmem:[%s0 + $0x2c] sm:$0xf]
  %v30 = vld [vmem:[%s0 + $0x30] sm:$0xf]
  %v31 = vld [vmem:[%s0 + $0x34] sm:$0xf]
  %v32 = vld [vmem:[%s0 + $0x38] sm:$0xf]
  %v33 = vld [vmem:[%s0 + $0x3c] sm:$0xf]
  %v34 = vld [vmem:[%s1] sm:$0xf]
  %v35 = vld [vmem:[%s1 + $0x4] sm:$0xf]
  %v36 = vld [vmem:[%s1 + $0x8] sm:$0xf]
  %v37 = vld [vmem:[%s1 + $0xc] sm:$0xf]
  %v38 = vld [vmem:[%s1 + $0x10] sm:$0xf]
  %v39 = vld [vmem:[%s1 + $0x14] sm:$0xf]
  %v40 = vld [vmem:[%s1 + $0x18] sm:$0xf]
  %v41 = vld [vmem:[%s1 + $0x1c] sm:$0xf]
  %v42 = vld [vmem:[%s1 + $0x20] sm:$0xf]
  %v43 = vld [vmem:[%s2] sm:$0x1]
  %v45 = vperm.slane %v43, 0
  %v63 = vunpack.c.l.b16 %v18
  %v64 = vunpack.c.l.b16 %v19
  %v65 = vunpack.c.l.b16 %v20
  %v66 = vunpack.c.l.b16 %v21
  %v67 = vunpack.c.l.b16 %v22
  %v68 = vunpack.c.l.b16 %v23
  %v69 = vunpack.c.l.b16 %v24
  %v70 = vunpack.c.l.b16 %v25
  %v71 = vunpack.c.l.b16 %v26
  %v72 = vunpack.c.l.b16 %v27
  %v73 = vunpack.c.l.b16 %v28
  %v74 = vunpack.c.l.b16 %v29
  %v75 = vunpack.c.l.b16 %v30
  %v76 = vunpack.c.l.b16 %v31
  %v77 = vunpack.c.l.b16 %v32
  %v78 = vunpack.c.l.b16 %v33
  %v79 = vpack.c.b16 %v64, %v63
  %v80 = vpack.c.b16 %v66, %v65
  %v81 = vpack.c.b16 %v68, %v67
  %v82 = vpack.c.b16 %v70, %v69
  %v83 = vpack.c.b16 %v72, %v71
  %v84 = vpack.c.b16 %v74, %v73
  %v85 = vpack.c.b16 %v76, %v75
  %v86 = vpack.c.b16 %v78, %v77
  %v96 = vunpack.c.l.b16 %v34
  %v97 = vunpack.c.l.b16 %v35
  %v98 = vunpack.c.l.b16 %v36
  %v99 = vunpack.c.l.b16 %v37
  %v100 = vunpack.c.l.b16 %v38
  %v101 = vunpack.c.l.b16 %v39
  %v102 = vunpack.c.l.b16 %v40
  %v103 = vunpack.c.l.b16 %v41
  %v104 = vunpack.c.l.b16 %v42
  %v105 = vpack.c.b16 %v97, %v96
  %v106 = vpack.c.b16 %v99, %v98
  %v107 = vpack.c.b16 %v101, %v100
  %v108 = vpack.c.b16 %v103, %v102
  %v109 = vpack.c.b16 %v104, %v104
  %vm114 = vcmask 588800
  %v116 = vsel %vm114, %v79, 0
  %v119 = vsel %vm114, %v80, 0
  %v122 = vsel %vm114, %v81, 0
  %v125 = vsel %vm114, %v82, 0
  %v128 = vsel %vm114, %v83, 0
  %v131 = vsel %vm114, %v84, 0
  %v134 = vsel %vm114, %v85, 0
  %v137 = vsel %vm114, %v86, 0
  %vm139 = vcmask 1043456
  %v141 = vsel %vm139, %v109, 0
  %143 = vmatpush.bf16.msra.mxu0 0
  %144 = vmatpush.bf16.msra.mxu0 0
  %145 = vmatpush.bf16.msra.mxu0 0
  %146 = vmatpush.bf16.msra.mxu0 %v141
  %147 = vmatpush.bf16.msra.mxu0 %v108
  %148 = vmatpush.bf16.msra.mxu0 %v107
  %149 = vmatpush.bf16.msra.mxu0 %v106
  %150 = vmatpush.bf16.msra.mxu0 %v105
  %151 = vmatmul.bf16.gmra.mxu0 %v116
  %v152 = vpop.f32.mrf.mxu0
  %v153 = vadd.f32 %v45, %v152
  %v154 = vpop.f32.mrf.mxu0
  %v155 = vadd.f32 %v45, %v154
  %156 = vmatmul.bf16.gmra.mxu0 %v119
  %v157 = vpop.f32.mrf.mxu0
  %v158 = vadd.f32 %v45, %v157
  %v159 = vpop.f32.mrf.mxu0
  %v160 = vadd.f32 %v45, %v159
  %161 = vmatmul.bf16.gmra.mxu0 %v122
  %v162 = vpop.f32.mrf.mxu0
  %v163 = vadd.f32 %v45, %v162
  %v164 = vpop.f32.mrf.mxu0
  %v165 = vadd.f32 %v45, %v164
  %166 = vmatmul.bf16.gmra.mxu0 %v125
  %v167 = vpop.f32.mrf.mxu0
  %v168 = vadd.f32 %v45, %v167
  %v169 = vpop.f32.mrf.mxu0
  %v170 = vadd.f32 %v45, %v169
  %171 = vmatmul.bf16.gmra.mxu0 %v128
  %v172 = vpop.f32.mrf.mxu0
  %v173 = vadd.f32 %v45, %v172
  %v174 = vpop.f32.mrf.mxu0
  %v175 = vadd.f32 %v45, %v174
  %176 = vmatmul.bf16.gmra.mxu0 %v131
  %v177 = vpop.f32.mrf.mxu0
  %v178 = vadd.f32 %v45, %v177
  %v179 = vpop.f32.mrf.mxu0
  %v180 = vadd.f32 %v45, %v179
  %181 = vmatmul.bf16.gmra.mxu0 %v134
  %v182 = vpop.f32.mrf.mxu0
  %v183 = vadd.f32 %v45, %v182
  %v184 = vpop.f32.mrf.mxu0
  %v185 = vadd.f32 %v45, %v184
  %186 = vmatmul.bf16.gmra.mxu0 %v137
  %v187 = vpop.f32.mrf.mxu0
  %v188 = vadd.f32 %v45, %v187
  %v189 = vpop.f32.mrf.mxu0
  %v190 = vadd.f32 %v45, %v189
  %191 = vdwg.mxu0
  %v192 = vld [vmem:[%s3] sm:$0xf]
  %v193 = vld [vmem:[%s3 + $0x4] sm:$0xf]
  %v194 = vld [vmem:[%s3 + $0x8] sm:$0xf]
  %v195 = vld [vmem:[%s3 + $0xc] sm:$0xf]
  %v196 = vld [vmem:[%s3 + $0x10] sm:$0xf]
  %v197 = vld [vmem:[%s3 + $0x14] sm:$0xf]
  %v198 = vld [vmem:[%s3 + $0x18] sm:$0xf]
  %v199 = vld [vmem:[%s3 + $0x1c] sm:$0xf]
  %v200 = vld [vmem:[%s3 + $0x20] sm:$0xf]
  %v201 = vld [vmem:[%s3 + $0x24] sm:$0xf]
  %v202 = vld [vmem:[%s3 + $0x28] sm:$0xf]
  %v203 = vld [vmem:[%s3 + $0x2c] sm:$0xf]
  %v204 = vld [vmem:[%s3 + $0x30] sm:$0xf]
  %v205 = vld [vmem:[%s3 + $0x34] sm:$0xf]
  %v206 = vld [vmem:[%s3 + $0x38] sm:$0xf]
  %v207 = vld [vmem:[%s3 + $0x3c] sm:$0xf]
  %v208 = vunpack.c.l.bf16 %v192
  %v209 = vunpack.c.l.bf16 %v193
  %v210 = vunpack.c.l.bf16 %v194
  %v211 = vunpack.c.l.bf16 %v195
  %v212 = vunpack.c.l.bf16 %v196
  %v213 = vunpack.c.l.bf16 %v197
  %v214 = vunpack.c.l.bf16 %v198
  %v215 = vunpack.c.l.bf16 %v199
  %v216 = vunpack.c.l.bf16 %v200
  %v217 = vunpack.c.l.bf16 %v201
  %v218 = vunpack.c.l.bf16 %v202
  %v219 = vunpack.c.l.bf16 %v203
  %v220 = vunpack.c.l.bf16 %v204
  %v221 = vunpack.c.l.bf16 %v205
  %v222 = vunpack.c.l.bf16 %v206
  %v223 = vunpack.c.l.bf16 %v207
  %v224 = vadd.f32 %v153, %v208
  %v225 = vadd.f32 %v155, %v209
  %v226 = vadd.f32 %v158, %v210
  %v227 = vadd.f32 %v160, %v211
  %v228 = vadd.f32 %v163, %v212
  %v229 = vadd.f32 %v165, %v213
  %v230 = vadd.f32 %v168, %v214
  %v231 = vadd.f32 %v170, %v215
  %v232 = vadd.f32 %v173, %v216
  %v233 = vadd.f32 %v175, %v217
  %v234 = vadd.f32 %v178, %v218
  %v235 = vadd.f32 %v180, %v219
  %v236 = vadd.f32 %v183, %v220
  %v237 = vadd.f32 %v185, %v221
  %v238 = vadd.f32 %v188, %v222
  %v239 = vadd.f32 %v190, %v223
  %v240 = vmax.f32 %v224, 0.0
  %v241 = vmax.f32 %v225, 0.0
  %v242 = vmax.f32 %v226, 0.0
  %v243 = vmax.f32 %v227, 0.0
  %v244 = vmax.f32 %v228, 0.0
  %v245 = vmax.f32 %v229, 0.0
  %v246 = vmax.f32 %v230, 0.0
  %v247 = vmax.f32 %v231, 0.0
  %v248 = vmax.f32 %v232, 0.0
  %v249 = vmax.f32 %v233, 0.0
  %v250 = vmax.f32 %v234, 0.0
  %v251 = vmax.f32 %v235, 0.0
  %v252 = vmax.f32 %v236, 0.0
  %v253 = vmax.f32 %v237, 0.0
  %v254 = vmax.f32 %v238, 0.0
  %v255 = vmax.f32 %v239, 0.0
  %256 = vst [vmem:[%s4] sm:$0xff] %v240
  %257 = vst [vmem:[%s4 + $0x8] sm:$0xff] %v241
  %258 = vst [vmem:[%s4 + $0x10] sm:$0xff] %v242
  %259 = vst [vmem:[%s4 + $0x18] sm:$0xff] %v243
  %260 = vst [vmem:[%s4 + $0x20] sm:$0xff] %v244
  %261 = vst [vmem:[%s4 + $0x28] sm:$0xff] %v245
  %262 = vst [vmem:[%s4 + $0x30] sm:$0xff] %v246
  %263 = vst [vmem:[%s4 + $0x38] sm:$0xff] %v247
  %264 = vst [vmem:[%s4 + $0x40] sm:$0xff] %v248
  %265 = vst [vmem:[%s4 + $0x48] sm:$0xff] %v249
  %266 = vst [vmem:[%s4 + $0x50] sm:$0xff] %v250
  %267 = vst [vmem:[%s4 + $0x58] sm:$0xff] %v251
  %268 = vst [vmem:[%s4 + $0x60] sm:$0xff] %v252
  %269 = vst [vmem:[%s4 + $0x68] sm:$0xff] %v253
  %270 = vst [vmem:[%s4 + $0x70] sm:$0xff] %v254
  %271 = vst [vmem:[%s4 + $0x78] sm:$0xff] %v255
  // Predicated region
  $region18: #{basic_block_forward.3} parent=0 // pred_check
    _
  $region19: #{basic_block_forward.3} parent=0 // pred_check_branch
    %273 = sbr.rel (0) target = $region21
  $region20: #{basic_block_forward.3} parent=0 // pred_region
    _
  $region21: #{basic_block_forward.3} parent=0 // pred_fallthru
    _
  // Predicated region
  $region22: #{basic_block_forward.3} parent=0 // pred_check
    _
  $region23: #{basic_block_forward.3} parent=0 // pred_check_branch
    %275 = sbr.rel (0) target = $region25
  $region24: #{basic_block_forward.3} parent=0 // pred_region
    _
  $region25: #{basic_block_forward.3} parent=0 // pred_fallthru
    _

// kernel: basic_block_forward.2
$region0: #{basic_block_forward.2}
  #allocation0 [shape = 'u32[]', space=smem, size = 0x4, offset = 0x4, fixed_abs, tag = 'smem constant byte address 0x4 - core index']
  #allocation1 [shape = 'u32[72,128]{1,0:T(1,128)}', space=vmem, size = 0x9000, scoped, tag = 'internal scratch']
  %s0 = inlined_call_operand.vmem [shape: bf16[128,36], index: 0, kind: input, shape index: {}]
  %s1 = inlined_call_operand.vmem [shape: bf16[36,256], index: 1, kind: input, shape index: {}]
  %s2 = inlined_call_operand.vmem [shape: f32[1,256], index: 2, kind: input, shape index: {}]
  %s3 = inlined_call_operand.vmem [shape: bf16[128,128], index: 3, kind: output, shape index: {0}]
  %s4 = inlined_call_operand.vmem [shape: bf16[128,128], index: 4, kind: output, shape index: {1}]
  %5 = xla_tuple %s3, %s4
  %s6 = sld [smem:[#allocation0]]
  $region30: #{basic_block_forward.2} parent=0
    _
  %s8 = ssub.s32 1, %s6
  %s9 = scalar_select 0, %s8, %s6
  // Predicated region
  $region2: #{basic_block_forward.2} parent=0 // pred_check
    _
  $region3: #{basic_block_forward.2} parent=0 // pred_check_branch
    %11 = sbr.rel (0) target = $region5
  $region4: #{basic_block_forward.2} parent=0 // pred_region
    _
  $region5: #{basic_block_forward.2} parent=0 // pred_fallthru
    _
  // Predicated region
  $region6: #{basic_block_forward.2} parent=0 // pred_check
    _
  $region7: #{basic_block_forward.2} parent=0 // pred_check_branch
    %13 = sbr.rel (0) target = $region9
  $region8: #{basic_block_forward.2} parent=0 // pred_region
    _
  $region9: #{basic_block_forward.2} parent=0 // pred_fallthru
    _
  // Predicated region
  $region10: #{basic_block_forward.2} parent=0 // pred_check
    _
  $region11: #{basic_block_forward.2} parent=0 // pred_check_branch
    %15 = sbr.rel (0) target = $region13
  $region12: #{basic_block_forward.2} parent=0 // pred_region
    _
  $region13: #{basic_block_forward.2} parent=0 // pred_fallthru
    _
  %v17 = vld [vmem:[%s0] sm:$0xf]
  %v18 = vld [vmem:[%s0 + $0x4] sm:$0xf]
  %v19 = vld [vmem:[%s0 + $0x8] sm:$0xf]
  %v20 = vld [vmem:[%s0 + $0xc] sm:$0xf]
  %v21 = vld [vmem:[%s0 + $0x10] sm:$0xf]
  %v22 = vld [vmem:[%s0 + $0x14] sm:$0xf]
  %v23 = vld [vmem:[%s0 + $0x18] sm:$0xf]
  %v24 = vld [vmem:[%s0 + $0x1c] sm:$0xf]
  %v25 = vld [vmem:[%s0 + $0x20] sm:$0xf]
  %v26 = vld [vmem:[%s0 + $0x24] sm:$0xf]
  %v27 = vld [vmem:[%s0 + $0x28] sm:$0xf]
  %v28 = vld [vmem:[%s0 + $0x2c] sm:$0xf]
  %v29 = vld [vmem:[%s0 + $0x30] sm:$0xf]
  %v30 = vld [vmem:[%s0 + $0x34] sm:$0xf]
  %v31 = vld [vmem:[%s0 + $0x38] sm:$0xf]
  %v32 = vld [vmem:[%s0 + $0x3c] sm:$0xf]
  %v33 = vld [vmem:[%s1] sm:$0xff]
  %v34 = vld [vmem:[%s1 + $0x8] sm:$0xff]
  %v35 = vld [vmem:[%s1 + $0x10] sm:$0xff]
  %v36 = vld [vmem:[%s1 + $0x18] sm:$0xff]
  %v37 = vld [vmem:[%s1 + $0x20] sm:$0x33]
  %v38 = vld [vmem:[%s2] sm:$0x3]
  %v40 = vperm.slane %v38, 0
  %v41 = vperm.slane %v38, 1
  %v60 = vunpack.c.l.b16 %v17
  %v61 = vunpack.c.l.b16 %v18
  %v62 = vunpack.c.l.b16 %v19
  %v63 = vunpack.c.l.b16 %v20
  %v64 = vunpack.c.l.b16 %v21
  %v65 = vunpack.c.l.b16 %v22
  %v66 = vunpack.c.l.b16 %v23
  %v67 = vunpack.c.l.b16 %v24
  %v68 = vunpack.c.l.b16 %v25
  %v69 = vunpack.c.l.b16 %v26
  %v70 = vunpack.c.l.b16 %v27
  %v71 = vunpack.c.l.b16 %v28
  %v72 = vunpack.c.l.b16 %v29
  %v73 = vunpack.c.l.b16 %v30
  %v74 = vunpack.c.l.b16 %v31
  %v75 = vunpack.c.l.b16 %v32
  %v76 = vpack.c.b16 %v61, %v60
  %v77 = vpack.c.b16 %v63, %v62
  %v78 = vpack.c.b16 %v65, %v64
  %v79 = vpack.c.b16 %v67, %v66
  %v80 = vpack.c.b16 %v69, %v68
  %v81 = vpack.c.b16 %v71, %v70
  %v82 = vpack.c.b16 %v73, %v72
  %v83 = vpack.c.b16 %v75, %v74
  %v89 = vunpack.c.l.b16 %v33
  %v90 = vunpack.c.h.b16 %v33
  %v91 = vunpack.c.l.b16 %v34
  %v92 = vunpack.c.h.b16 %v34
  %v93 = vunpack.c.l.b16 %v35
  %v94 = vunpack.c.h.b16 %v35
  %v95 = vunpack.c.l.b16 %v36
  %v96 = vunpack.c.h.b16 %v36
  %v97 = vunpack.c.l.b16 %v37
  %v98 = vunpack.c.h.b16 %v37
  %v99 = vpack.c.b16 %v91, %v89
  %v100 = vpack.c.b16 %v92, %v90
  %v101 = vpack.c.b16 %v95, %v93
  %v102 = vpack.c.b16 %v96, %v94
  %v103 = vpack.c.b16 %v97, %v97
  %v104 = vpack.c.b16 %v98, %v98
  %vm109 = vcmask 293888
  %v111 = vsel %vm109, %v76, 0
  %v114 = vsel %vm109, %v77, 0
  %v117 = vsel %vm109, %v78, 0
  %v120 = vsel %vm109, %v79, 0
  %v123 = vsel %vm109, %v80, 0
  %v126 = vsel %vm109, %v81, 0
  %v129 = vsel %vm109, %v82, 0
  %v132 = vsel %vm109, %v83, 0
  %vm134 = vcmask 1041408
  %v136 = vsel %vm134, %v103, 0
  %v139 = vsel %vm134, %v104, 0
  %141 = vmatpush.bf16.msra.mxu0 0
  %142 = vmatpush.bf16.msra.mxu0 0
  %143 = vmatpush.bf16.msra.mxu0 0
  %144 = vmatpush.bf16.msra.mxu0 0
  %145 = vmatpush.bf16.msra.mxu0 0
  %146 = vmatpush.bf16.msra.mxu0 %v136
  %147 = vmatpush.bf16.msra.mxu0 %v101
  %148 = vmatpush.bf16.msra.mxu0 %v99
  %149 = vmatmul.bf16.gmra.mxu0 %v111
  %v150 = vpop.f32.mrf.mxu0
  %v151 = vadd.f32 %v40, %v150
  %v152 = vpop.f32.mrf.mxu0
  %v153 = vadd.f32 %v40, %v152
  %154 = vmatmul.bf16.gmra.mxu0 %v114
  %v155 = vpop.f32.mrf.mxu0
  %v156 = vadd.f32 %v40, %v155
  %v157 = vpop.f32.mrf.mxu0
  %v158 = vadd.f32 %v40, %v157
  %159 = vmatmul.bf16.gmra.mxu0 %v117
  %v160 = vpop.f32.mrf.mxu0
  %v161 = vadd.f32 %v40, %v160
  %v162 = vpop.f32.mrf.mxu0
  %v163 = vadd.f32 %v40, %v162
  %164 = vmatmul.bf16.gmra.mxu0 %v120
  %v165 = vpop.f32.mrf.mxu0
  %v166 = vadd.f32 %v40, %v165
  %v167 = vpop.f32.mrf.mxu0
  %v168 = vadd.f32 %v40, %v167
  %169 = vmatmul.bf16.gmra.mxu0 %v123
  %v170 = vpop.f32.mrf.mxu0
  %v171 = vadd.f32 %v40, %v170
  %v172 = vpop.f32.mrf.mxu0
  %v173 = vadd.f32 %v40, %v172
  %174 = vmatmul.bf16.gmra.mxu0 %v126
  %v175 = vpop.f32.mrf.mxu0
  %v176 = vadd.f32 %v40, %v175
  %v177 = vpop.f32.mrf.mxu0
  %v178 = vadd.f32 %v40, %v177
  %179 = vmatmul.bf16.gmra.mxu0 %v129
  %v180 = vpop.f32.mrf.mxu0
  %v181 = vadd.f32 %v40, %v180
  %v182 = vpop.f32.mrf.mxu0
  %v183 = vadd.f32 %v40, %v182
  %184 = vmatmul.bf16.gmra.mxu0 %v132
  %v185 = vpop.f32.mrf.mxu0
  %v186 = vadd.f32 %v40, %v185
  %v187 = vpop.f32.mrf.mxu0
  %v188 = vadd.f32 %v40, %v187
  %189 = vdwg.mxu0
  %190 = vmatpush.bf16.msra.mxu0 0
  %191 = vmatpush.bf16.msra.mxu0 0
  %192 = vmatpush.bf16.msra.mxu0 0
  %193 = vmatpush.bf16.msra.mxu0 0
  %194 = vmatpush.bf16.msra.mxu0 0
  %195 = vmatpush.bf16.msra.mxu0 %v139
  %196 = vmatpush.bf16.msra.mxu0 %v102
  %197 = vmatpush.bf16.msra.mxu0 %v100
  %198 = vmatmul.bf16.gmra.mxu0 %v111
  %v199 = vpop.f32.mrf.mxu0
  %v200 = vadd.f32 %v41, %v199
  %v201 = vpop.f32.mrf.mxu0
  %v202 = vadd.f32 %v41, %v201
  %203 = vmatmul.bf16.gmra.mxu0 %v114
  %v204 = vpop.f32.mrf.mxu0
  %v205 = vadd.f32 %v41, %v204
  %v206 = vpop.f32.mrf.mxu0
  %v207 = vadd.f32 %v41, %v206
  %208 = vmatmul.bf16.gmra.mxu0 %v117
  %v209 = vpop.f32.mrf.mxu0
  %v210 = vadd.f32 %v41, %v209
  %v211 = vpop.f32.mrf.mxu0
  %v212 = vadd.f32 %v41, %v211
  %213 = vmatmul.bf16.gmra.mxu0 %v120
  %v214 = vpop.f32.mrf.mxu0
  %v215 = vadd.f32 %v41, %v214
  %v216 = vpop.f32.mrf.mxu0
  %v217 = vadd.f32 %v41, %v216
  %218 = vmatmul.bf16.gmra.mxu0 %v123
  %v219 = vpop.f32.mrf.mxu0
  %v220 = vadd.f32 %v41, %v219
  %v221 = vpop.f32.mrf.mxu0
  %v222 = vadd.f32 %v41, %v221
  %223 = vmatmul.bf16.gmra.mxu0 %v126
  %v224 = vpop.f32.mrf.mxu0
  %v225 = vadd.f32 %v41, %v224
  %v226 = vpop.f32.mrf.mxu0
  %v227 = vadd.f32 %v41, %v226
  %228 = vmatmul.bf16.gmra.mxu0 %v129
  %v229 = vpop.f32.mrf.mxu0
  %v230 = vadd.f32 %v41, %v229
  %v231 = vpop.f32.mrf.mxu0
  %v232 = vadd.f32 %v41, %v231
  %233 = vmatmul.bf16.gmra.mxu0 %v132
  %v234 = vpop.f32.mrf.mxu0
  %v235 = vadd.f32 %v41, %v234
  %v236 = vpop.f32.mrf.mxu0
  %v237 = vadd.f32 %v41, %v236
  %238 = vdwg.mxu0
  %v239 = vpack.c.bf16 %v200, %v200
  %v240 = vpack.c.bf16 %v202, %v202
  %v241 = vpack.c.bf16 %v205, %v205
  %v242 = vpack.c.bf16 %v207, %v207
  %v243 = vpack.c.bf16 %v210, %v210
  %v244 = vpack.c.bf16 %v212, %v212
  %v245 = vpack.c.bf16 %v215, %v215
  %v246 = vpack.c.bf16 %v217, %v217
  %v247 = vpack.c.bf16 %v220, %v220
  %v248 = vpack.c.bf16 %v222, %v222
  %v249 = vpack.c.bf16 %v225, %v225
  %v250 = vpack.c.bf16 %v227, %v227
  %v251 = vpack.c.bf16 %v230, %v230
  %v252 = vpack.c.bf16 %v232, %v232
  %v253 = vpack.c.bf16 %v235, %v235
  %v254 = vpack.c.bf16 %v237, %v237
  %255 = vst [vmem:[%s4] sm:$0xf] %v239
  %256 = vst [vmem:[%s4 + $0x4] sm:$0xf] %v240
  %257 = vst [vmem:[%s4 + $0x8] sm:$0xf] %v241
  %258 = vst [vmem:[%s4 + $0xc] sm:$0xf] %v242
  %259 = vst [vmem:[%s4 + $0x10] sm:$0xf] %v243
  %260 = vst [vmem:[%s4 + $0x14] sm:$0xf] %v244
  %261 = vst [vmem:[%s4 + $0x18] sm:$0xf] %v245
  %262 = vst [vmem:[%s4 + $0x1c] sm:$0xf] %v246
  %263 = vst [vmem:[%s4 + $0x20] sm:$0xf] %v247
  %264 = vst [vmem:[%s4 + $0x24] sm:$0xf] %v248
  %265 = vst [vmem:[%s4 + $0x28] sm:$0xf] %v249
  %266 = vst [vmem:[%s4 + $0x2c] sm:$0xf] %v250
  %267 = vst [vmem:[%s4 + $0x30] sm:$0xf] %v251
  %268 = vst [vmem:[%s4 + $0x34] sm:$0xf] %v252
  %269 = vst [vmem:[%s4 + $0x38] sm:$0xf] %v253
  %270 = vst [vmem:[%s4 + $0x3c] sm:$0xf] %v254
  %v271 = vmax.f32 %v151, 0.0
  %v272 = vmax.f32 %v153, 0.0
  %v273 = vmax.f32 %v156, 0.0
  %v274 = vmax.f32 %v158, 0.0
  %v275 = vmax.f32 %v161, 0.0
  %v276 = vmax.f32 %v163, 0.0
  %v277 = vmax.f32 %v166, 0.0
  %v278 = vmax.f32 %v168, 0.0
  %v279 = vmax.f32 %v171, 0.0
  %v280 = vmax.f32 %v173, 0.0
  %v281 = vmax.f32 %v176, 0.0
  %v282 = vmax.f32 %v178, 0.0
  %v283 = vmax.f32 %v181, 0.0
  %v284 = vmax.f32 %v183, 0.0
  %v285 = vmax.f32 %v186, 0.0
  %v286 = vmax.f32 %v188, 0.0
  %v287 = vpack.c.bf16 %v271, %v271
  %v288 = vpack.c.bf16 %v272, %v272
  %v289 = vpack.c.bf16 %v273, %v273
  %v290 = vpack.c.bf16 %v274, %v274
  %v291 = vpack.c.bf16 %v275, %v275
  %v292 = vpack.c.bf16 %v276, %v276
  %v293 = vpack.c.bf16 %v277, %v277
  %v294 = vpack.c.bf16 %v278, %v278
  %v295 = vpack.c.bf16 %v279, %v279
  %v296 = vpack.c.bf16 %v280, %v280
  %v297 = vpack.c.bf16 %v281, %v281
  %v298 = vpack.c.bf16 %v282, %v282
  %v299 = vpack.c.bf16 %v283, %v283
  %v300 = vpack.c.bf16 %v284, %v284
  %v301 = vpack.c.bf16 %v285, %v285
  %v302 = vpack.c.bf16 %v286, %v286
  %303 = vst [vmem:[%s3] sm:$0xf] %v287
  %304 = vst [vmem:[%s3 + $0x4] sm:$0xf] %v288
  %305 = vst [vmem:[%s3 + $0x8] sm:$0xf] %v289
  %306 = vst [vmem:[%s3 + $0xc] sm:$0xf] %v290
  %307 = vst [vmem:[%s3 + $0x10] sm:$0xf] %v291
  %308 = vst [vmem:[%s3 + $0x14] sm:$0xf] %v292
  %309 = vst [vmem:[%s3 + $0x18] sm:$0xf] %v293
  %310 = vst [vmem:[%s3 + $0x1c] sm:$0xf] %v294
  %311 = vst [vmem:[%s3 + $0x20] sm:$0xf] %v295
  %312 = vst [vmem:[%s3 + $0x24] sm:$0xf] %v296
  %313 = vst [vmem:[%s3 + $0x28] sm:$0xf] %v297
  %314 = vst [vmem:[%s3 + $0x2c] sm:$0xf] %v298
  %315 = vst [vmem:[%s3 + $0x30] sm:$0xf] %v299
  %316 = vst [vmem:[%s3 + $0x34] sm:$0xf] %v300
  %317 = vst [vmem:[%s3 + $0x38] sm:$0xf] %v301
  %318 = vst [vmem:[%s3 + $0x3c] sm:$0xf] %v302
  // Predicated region
  $region14: #{basic_block_forward.2} parent=0 // pred_check
    _
  $region15: #{basic_block_forward.2} parent=0 // pred_check_branch
    %320 = sbr.rel (0) target = $region17
  $region16: #{basic_block_forward.2} parent=0 // pred_region
    _
  $region17: #{basic_block_forward.2} parent=0 // pred_fallthru
    _
  // Predicated region
  $region18: #{basic_block_forward.2} parent=0 // pred_check
    _
  $region19: #{basic_block_forward.2} parent=0 // pred_check_branch
    %322 = sbr.rel (0) target = $region21
  $region20: #{basic_block_forward.2} parent=0 // pred_region
    _
  $region21: #{basic_block_forward.2} parent=0 // pred_fallthru
    _
  // Predicated region
  $region22: #{basic_block_forward.2} parent=0 // pred_check
    _
  $region23: #{basic_block_forward.2} parent=0 // pred_check_branch
    %324 = sbr.rel (0) target = $region25
  $region24: #{basic_block_forward.2} parent=0 // pred_region
    _
  $region25: #{basic_block_forward.2} parent=0 // pred_fallthru
    _
  // Predicated region
  $region26: #{basic_block_forward.2} parent=0 // pred_check
    _
  $region27: #{basic_block_forward.2} parent=0 // pred_check_branch
    %326 = sbr.rel (0) target = $region29
  $region28: #{basic_block_forward.2} parent=0 // pred_region
    _
  $region29: #{basic_block_forward.2} parent=0 // pred_fallthru
    _

</llo_original>
